<compile_context>
chip_gen: v6e
topology: v6e:2x2x1
jax: 0.10.0
libtpu: 0.0.40
codegen_flags: <defaults>
</compile_context>

<pallas_src>
import math
import numpy as np

import jax
import jax.numpy as jnp
from jax import lax
from jax.experimental import pallas as pl
from jax.experimental.pallas import tpu as pltpu


# ----------------------------------------------------------------------------
# numpy setup helpers (run once at parameter construction time)
# ----------------------------------------------------------------------------

def _wigner_d_matrix(l, beta):
    """Wigner small-d matrix d^l_{m',m}(beta), indexed [m'+l, m+l]."""
    d = np.zeros((2 * l + 1, 2 * l + 1), dtype=np.float64)
    c = math.cos(beta / 2.0)
    s = math.sin(beta / 2.0)
    for i, mr in enumerate(range(-l, l + 1)):
        for j, mc in enumerate(range(-l, l + 1)):
            smin = max(0, mc - mr)
            smax = min(l + mc, l - mr)
            if smin > smax:
                continue
            pref = math.sqrt(math.factorial(l + mc) * math.factorial(l - mc)
                             * math.factorial(l + mr) * math.factorial(l - mr))
            tot = 0.0
            for ss in range(smin, smax + 1):
                denom = (math.factorial(l + mc - ss) * math.factorial(ss)
                         * math.factorial(mr - mc + ss) * math.factorial(l - mr - ss))
                tot += ((-1.0) ** (mr - mc + ss)) / denom \
                       * (c ** (2 * l + mc - mr - 2 * ss)) * (s ** (mr - mc + 2 * ss))
            d[i, j] = pref * tot
    return d


def _dh_quadrature(b):
    """Driscoll-Healy style beta sample points and quadrature weights for bandwidth b."""
    k = np.arange(2 * b)
    beta = np.pi * (2 * k + 1) / (4 * b)
    w = np.zeros(2 * b)
    for i in range(2 * b):
        acc = 0.0
        for j in range(b):
            acc += math.sin((2 * j + 1) * beta[i]) / (2 * j + 1)
        w[i] = (2.0 / b) * math.sin(beta[i]) * acc
    return beta, w


def so3_near_identity_grid(max_beta, n_alpha=6, n_beta=1, max_gamma=2 * np.pi, n_gamma=6):
    """Mirror of s2cnn.so3_near_identity_grid: (n_grid, 3) array of (alpha, beta, gamma)."""
    beta = np.arange(1, n_beta + 1, dtype=np.float64) * max_beta / n_beta
    alpha = np.linspace(0, 2 * np.pi, n_alpha, endpoint=False)
    pre_gamma = np.linspace(-max_gamma, max_gamma, n_gamma, endpoint=False)
    A, B, preC = np.meshgrid(alpha, beta, pre_gamma, indexing="ij")
    C = preC - A
    return np.stack([A.flatten(), B.flatten(), C.flatten()], axis=1)


def _wigner_D_grid(l, grid):
    """D^l_{m,n}(alpha,beta,gamma) = e^{i m a} d^l_{mn}(b) e^{i n c}, shape (n_grid, 2l+1, 2l+1)."""
    ms = np.arange(-l, l + 1)
    out = np.zeros((grid.shape[0], 2 * l + 1, 2 * l + 1), dtype=np.complex64)
    for g in range(grid.shape[0]):
        a, bta, c = grid[g]
        dmat = _wigner_d_matrix(l, bta)
        out[g] = (np.exp(1j * ms * a)[:, None] * dmat * np.exp(1j * ms * c)[None, :]
                  ).astype(np.complex64)
    return out


def _pad_to(n, m):
    return ((n + m - 1) // m) * m


def make_so3_conv_params(key, c_in, c_out, b_in, b_out, grid):
    """SO3Convolution parameters + precomputed packed spectral constants."""
    n_grid = grid.shape[0]
    kernel = jax.random.normal(key, (c_in, c_out, n_grid), dtype=jnp.float32)
    scaling = 1.0 / math.sqrt(n_grid * c_in * (b_out ** 3.0) / (b_in ** 3.0))
    bias = np.zeros((c_out,), np.float32)

    n_in, n_out = 2 * b_in, 2 * b_out
    beta_in, w_in = _dh_quadrature(b_in)
    beta_out = np.pi * (2 * np.arange(n_out) + 1) / (4 * b_out)

    Mfreq = 2 * b_out - 1                       # global m frequencies -(b_out-1)..(b_out-1)
    Ncol = b_out * b_out                        # packed (l, p) / (l, n) column pairs
    Ktrue, Ntrue = Ncol * c_in, Ncol * c_out
    Kp, Np = _pad_to(Ktrue, 128), _pad_to(Ntrue, 128)

    m_vals = np.arange(-(b_out - 1), b_out)                                   # (Mfreq,)
    col_l = np.concatenate([np.full(2 * l + 1, l) for l in range(b_out)])     # (Ncol,)
    col_p = np.concatenate([np.arange(-l, l + 1) for l in range(b_out)])      # (Ncol,)

    d_in = [np.stack([_wigner_d_matrix(l, bk) for bk in beta_in], axis=0) for l in range(b_out)]
    d_out = [np.stack([_wigner_d_matrix(l, bk) for bk in beta_out], axis=0) for l in range(b_out)]

    # ---- forward plan: Tf[k, m, (l,p)] = d^l_{m,p}(beta_k) * w_k / n_in^2   (0 when |m| > l)
    Tf = np.zeros((n_in, Mfreq, Ncol), np.float32)
    for c in range(Ncol):
        l, p = int(col_l[c]), int(col_p[c])
        for mi, m in enumerate(m_vals):
            if abs(m) <= l:
                Tf[:, mi, c] = d_in[l][:, m + l, p + l] * w_in / float(n_in * n_in)
    # pre-transpose to (Mfreq, Ncol, n_in) so the runtime contraction has no const-side transpose
    TfT = np.ascontiguousarray(np.transpose(Tf, (1, 2, 0)))
    mbins = (m_vals % n_in).astype(np.int32)
    pbins = (col_p % n_in).astype(np.int32)

    # ---- effective block-diagonal spectral weight, real / imag parts (unpadded)
    kern_np = np.asarray(kernel).astype(np.complex64) * scaling
    Br = np.zeros((Ktrue, Ntrue), np.float32)
    Bi = np.zeros((Ktrue, Ntrue), np.float32)
    for l in range(b_out):
        L = 2 * l + 1
        Dg = _wigner_D_grid(l, grid)                              # (n_grid, L, L)
        psi = np.einsum("fjg,gnp->npfj", kern_np, Dg)             # (L(n), L(p), c_in, c_out)
        blk = np.transpose(psi, (1, 2, 0, 3)).reshape(L * c_in, L * c_out)    # rows (p,f), cols (n,j)
        off = l * l
        r0, c0 = off * c_in, off * c_out
        Br[r0:r0 + L * c_in, c0:c0 + L * c_out] = blk.real
        Bi[r0:r0 + L * c_in, c0:c0 + L * c_out] = blk.imag

    # ---- inverse plan: TS[k, m, (l,n), n_idx] = (2l+1) d^l_{m,n}(beta'_k) [n_idx matches n]
    TS = np.zeros((n_out, Mfreq, Ncol, Mfreq), np.float32)
    for c in range(Ncol):
        l, nval = int(col_l[c]), int(col_p[c])
        ni = nval + (b_out - 1)
        for mi, m in enumerate(m_vals):
            if abs(m) <= l:
                TS[:, mi, c, ni] = (2 * l + 1) * d_out[l][:, m + l, nval + l]
    # pre-transpose to (Mfreq, n_out, Mfreq, Ncol)
    TST = np.ascontiguousarray(np.transpose(TS, (1, 0, 3, 2)))

    return dict(b_in=b_in, b_out=b_out, c_in=c_in, c_out=c_out,
                Kp=Kp, Np=Np, Mfreq=Mfreq, Ncol=Ncol,
                Tf=jnp.asarray(TfT), mbins=mbins, pbins=pbins,
                TS=jnp.asarray(TST),
                Br=Br, Bi=Bi,
                bias=jnp.asarray(bias))


def _build_block_real(Br, Bi, Kp, Np):
    """Complex weight (Br + i Bi) -> real block matrix [[Br, Bi], [-Bi, Br]] padded to (2Kp, 2Np)."""
    K, N = Br.shape
    out = np.zeros((2 * Kp, 2 * Np), np.float32)
    out[:K, :N] = Br
    out[:K, Np:Np + N] = Bi
    out[Kp:Kp + K, :N] = -Bi
    out[Kp:Kp + K, Np:Np + N] = Br
    return out


def make_residual_block_params(key, channels1, channels2, bandwidth, beta_div):
    grid = so3_near_identity_grid(max_beta=np.pi / beta_div, n_alpha=6, n_beta=1,
                                  max_gamma=2 * np.pi, n_gamma=6)
    k1, k2, k3 = jax.random.split(key, 3)
    p1 = make_so3_conv_params(k1, channels1, channels1, bandwidth, bandwidth, grid)
    p2 = make_so3_conv_params(k2, channels1, channels2, bandwidth, bandwidth // 2, grid)
    ps = make_so3_conv_params(k3, channels1, channels2, bandwidth, bandwidth // 2, grid)
    assert p1["b_in"] == ps["b_in"] and p1["c_in"] == ps["c_in"] and p1["b_out"] >= ps["b_out"]

    # conv1 + shortcut fused block-real spectral weight: the shortcut's rows (degrees
    # l < b_short) are a prefix of conv1's K packing, so zero-extend it to conv1's Kp rows
    # and concatenate along N -> Z = A1 @ [B1 | Bs] in a single MXU dot; Z1 / Zs are slices.
    B1p = _build_block_real(p1["Br"], p1["Bi"], p1["Kp"], p1["Np"])
    Bsp = _build_block_real(ps["Br"], ps["Bi"], p1["Kp"], ps["Np"])
    Bfused = np.concatenate([B1p, Bsp], axis=1)                   # (2*Kp1, 2*Np1 + 2*Nps)
    B2p = _build_block_real(p2["Br"], p2["Bi"], p2["Kp"], p2["Np"])

    def strip(p):
        q = dict(p)
        del q["Br"], q["Bi"]
        return q

    return dict(conv1=strip(p1), conv2=strip(p2), shortcut=strip(ps),
                Bfused=jnp.asarray(Bfused), B2=jnp.asarray(B2p))


# ----------------------------------------------------------------------------
# Pallas kernels (hot path)
# ----------------------------------------------------------------------------

_VMEM_LIMIT = 32 * 1024 * 1024   # explicit scoped-VMEM budget, safe on v5e / v6e / v7x


def _pick_lane_tile(lanes, max_tile):
    """Largest lane-dense tile: full extent when it fits, else a 128-multiple divisor."""
    if lanes <= max_tile:
        return lanes
    for t in (8192, 4096, 2048, 1024, 512, 256, 128):
        if t <= max_tile and lanes % t == 0:
            return t
    return lanes


def _spectral_mm_kernel(a_ref, b_ref, z_ref):
    """Single real block matmul on the MXU.

    a_ref : (Mp, 2*Kp)   f32  -- [Ar | Ai]
    b_ref : (2*Kp, tn)   f32  -- columns of [[Br, Bi], [-Bi, Br]]  (possibly several convs on N)
    z_ref : (Mp, tn)     f32  -- columns of [Zr | Zi]
    """
    z_ref[...] = jnp.dot(a_ref[...], b_ref[...], preferred_element_type=jnp.float32)


def spectral_mm(A, Bmat):
    """A: (Mp, 2Kp) f32, Bmat: (2Kp, 2Np_total) f32 -> Z: (Mp, 2Np_total) f32."""
    Mp, K2 = A.shape
    N2 = Bmat.shape[1]
    # TODO(synk): on v7x, split N into >=2 "parallel" tiles to occupy both TensorCores and add
    #             a K grid + f32 VMEM accumulator once 2Kp no longer fits its 64 MiB VMEM; at
    #             these sizes one biggest block (grid of 1) is optimal on v5e/v6e.
    tn = _pick_lane_tile(N2, max_tile=2048)
    cost = pl.CostEstimate(flops=int(2 * Mp * K2 * N2), transcendentals=0,
                           bytes_accessed=int(4 * (Mp * K2 + K2 * N2 + Mp * N2)))
    return pl.pallas_call(
        _spectral_mm_kernel,
        out_shape=jax.ShapeDtypeStruct((Mp, N2), jnp.float32),
        grid=(N2 // tn,),
        in_specs=[pl.BlockSpec((Mp, K2), lambda j: (0, 0)),
                  pl.BlockSpec((K2, tn), lambda j: (0, j))],
        out_specs=pl.BlockSpec((Mp, tn), lambda j: (0, j)),
        compiler_params=pltpu.CompilerParams(dimension_semantics=("parallel",),
                                             vmem_limit_bytes=_VMEM_LIMIT),
        cost_estimate=cost,
    )(A, Bmat)


def spectral_mm_ref(A, Bmat):
    """Pure-JAX reference for the Pallas spectral matmul (same packing, full f32 precision)."""
    return jnp.dot(A, Bmat, precision=lax.Precision.HIGHEST,
                   preferred_element_type=jnp.float32)


def _bias_relu_kernel(x_ref, b_ref, o_ref):
    o_ref[...] = jnp.maximum(x_ref[...] + b_ref[...], 0.0)


def _add_bias_relu_kernel(x_ref, y_ref, b_ref, o_ref):
    o_ref[...] = jnp.maximum(x_ref[...] + y_ref[...] + b_ref[...], 0.0)


def _epilogue_call(kernel, arrays, bias):
    """Fused per-channel bias (+ optional residual add) + ReLU, lane-dense layout.

    Activations (B, C, a, b, g) are flattened to (B, C*spatial) so the output store is a
    fully unmasked, lane-dense vst; bias is a precomputed per-lane row (1, C*spatial) that
    broadcasts along sublanes for free.
    """
    x5d = arrays[0]
    Bb, C = x5d.shape[0], x5d.shape[1]
    spatial = int(np.prod(x5d.shape[2:]))
    lanes = C * spatial
    flat = [a.reshape(Bb, lanes) for a in arrays]
    blane = jnp.repeat(bias, spatial).reshape(1, lanes)        # lane = c*spatial + s -> bias[c]
    tl = _pick_lane_tile(lanes, max_tile=8192)
    act_spec = pl.BlockSpec((Bb, tl), lambda j: (0, j))
    b_spec = pl.BlockSpec((1, tl), lambda j: (0, j))
    nin = len(flat)
    cost = pl.CostEstimate(flops=int((nin + 1) * Bb * lanes), transcendentals=0,
                           bytes_accessed=int(4 * ((nin + 1) * Bb * lanes + lanes)))
    y = pl.pallas_call(
        kernel,
        out_shape=jax.ShapeDtypeStruct((Bb, lanes), x5d.dtype),
        grid=(lanes // tl,),
        in_specs=[act_spec] * nin + [b_spec],
        out_specs=act_spec,
        compiler_params=pltpu.CompilerParams(dimension_semantics=("parallel",),
                                             vmem_limit_bytes=_VMEM_LIMIT),
        cost_estimate=cost,
    )(*flat, blane)
    return y.reshape(x5d.shape)


def bias_relu(x, bias, use_pallas=True):
    if not use_pallas:
        return jnp.maximum(x + bias[None, :, None, None, None], 0.0)
    return _epilogue_call(_bias_relu_kernel, [x], bias)


def add_bias_relu(x, y, bias_total, use_pallas=True):
    if not use_pallas:
        return jnp.maximum(x + y + bias_total[None, :, None, None, None], 0.0)
    return _epilogue_call(_add_bias_relu_kernel, [x, y], bias_total)


# ----------------------------------------------------------------------------
# SO(3) FFT glue (plain JAX, fully vectorized -- no per-degree Python loops at runtime)
# ----------------------------------------------------------------------------
# TODO(synk): these transforms (jnp.fft + Wigner-d einsum contractions) stay in XLA.

def so3_fft_packed(x, p):
    """x: (B, c_in, n_in, n_in, n_in) f32 -> packed fhat (Mfreq, B, Ncol, c_in) complex64."""
    xf = jnp.fft.fft2(x.astype(jnp.complex64), axes=(2, 4))        # (B, c, m_alpha, beta, p_gamma)
    xg = jnp.take(xf, jnp.asarray(p["mbins"]), axis=2)
    xg = jnp.take(xg, jnp.asarray(p["pbins"]), axis=4)             # (B, c, Mfreq, n_in, Ncol)
    return jnp.einsum("mck,bfmkc->mbcf", p["Tf"], xg)              # (Mfreq, B, Ncol, c_in)


def pack_A(fhat, Mp, Kp):
    """fhat (Mfreq, B, Ncol, c_in) complex -> (Mp, 2*Kp) f32 with [Ar | Ai] along columns."""
    Mfreq, Bb, Ncol, c_in = fhat.shape
    Aflat = fhat.reshape(Mfreq * Bb, Ncol * c_in)
    Apad = jnp.pad(Aflat, ((0, Mp - Mfreq * Bb), (0, Kp - Ncol * c_in)))
    return jnp.concatenate([jnp.real(Apad), jnp.imag(Apad)], axis=1).astype(jnp.float32)


def _freq_pad(H, b_out, axis):
    """Reorder m = -(b-1)..(b-1) into FFT-bin order of length 2b (zero at the missing bin)."""
    top = lax.slice_in_dim(H, b_out - 1, 2 * b_out - 1, axis=axis)   # m = 0..b-1
    bot = lax.slice_in_dim(H, 0, b_out - 1, axis=axis)               # m = -(b-1)..-1
    zshape = list(H.shape)
    zshape[axis] = 1
    return jnp.concatenate([top, jnp.zeros(zshape, H.dtype), bot], axis=axis)


def so3_ifft_apply(Z, p, Bb):
    """Z: (rows >= Mfreq*B, 2*Np) f32 spectral [Zr | Zi] -> spatial (B, c_out, 2b, 2b, 2b) f32."""
    b_out, c_out = p["b_out"], p["c_out"]
    Mfreq, Ncol, Np, n_out = p["Mfreq"], p["Ncol"], p["Np"], 2 * p["b_out"]
    zr = Z[:Mfreq * Bb, :Ncol * c_out]
    zi = Z[:Mfreq * Bb, Np:Np + Ncol * c_out]
    Zc = (zr + 1j * zi).astype(jnp.complex64).reshape(Mfreq, Bb, Ncol, c_out)
    H = jnp.einsum("mknc,mbcj->mnkbj", p["TS"], Zc)                  # (Mfreq, Mfreq, n_out, B, c_out)
    G = _freq_pad(_freq_pad(H, b_out, 0), b_out, 1)                  # (n_out, n_out, n_out, B, c_out)
    sig = jnp.real(jnp.fft.ifft2(G, axes=(0, 1))) * float(n_out * n_out)
    return jnp.transpose(sig, (3, 4, 0, 2, 1))                       # (B, c_out, alpha, beta, gamma)


# ----------------------------------------------------------------------------
# ResidualBlock forward
# ----------------------------------------------------------------------------

def residual_block_forward(x, params, use_pallas=True):
    p1, p2, ps = params["conv1"], params["conv2"], params["shortcut"]
    Bb = x.shape[0]
    mm = spectral_mm if use_pallas else spectral_mm_ref

    # --- forward SO(3) FFT of x once; conv1 and the shortcut conv share it
    fhat1 = so3_fft_packed(x, p1)                                    # (Mfreq1, B, Ncol1, c_in)

    Mp1 = _pad_to(p1["Mfreq"] * Bb, 8)
    A1 = pack_A(fhat1, Mp1, p1["Kp"])                                # (Mp1, 2*Kp1)

    # --- conv1 + shortcut spectral matmuls fused into ONE MXU dot (lane-dense output)
    Zfull = mm(A1, params["Bfused"])                                 # (Mp1, 2*Np1 + 2*Nps)
    Z1 = Zfull[:, :2 * p1["Np"]]
    row0 = (p1["b_out"] - ps["b_out"]) * Bb                          # central m-band of conv1 packing
    Zs = Zfull[row0:row0 + ps["Mfreq"] * Bb, 2 * p1["Np"]:]

    out1 = so3_ifft_apply(Z1, p1, Bb)
    sc = so3_ifft_apply(Zs, ps, Bb)

    # --- conv1 epilogue: fused bias + ReLU (Pallas, lane-dense)
    out1 = bias_relu(out1, p1["bias"], use_pallas)

    # --- conv2
    fhat2 = so3_fft_packed(out1, p2)
    Mp2 = _pad_to(p2["Mfreq"] * Bb, 8)
    A2 = pack_A(fhat2, Mp2, p2["Kp"])
    Z2 = mm(A2, params["B2"])
    out2 = so3_ifft_apply(Z2, p2, Bb)

    # --- residual epilogue: fused (conv2 bias + shortcut bias) + add + ReLU (Pallas, lane-dense)
    return add_bias_relu(out2, sc, p2["bias"] + ps["bias"], use_pallas)


# ----------------------------------------------------------------------------
# Main
# ----------------------------------------------------------------------------

if __name__ == "__main__":
    batch, channels1, channels2, bandwidth, beta_div = 2, 4, 8, 4, 8

    key = jax.random.PRNGKey(0)
    kx, kp = jax.random.split(key)

    x = jax.random.normal(
        kx, (batch, channels1, 2 * bandwidth, 2 * bandwidth, 2 * bandwidth), dtype=jnp.float32)

    params = make_residual_block_params(kp, channels1, channels2, bandwidth, beta_div)

    forward = jax.jit(lambda xin: residual_block_forward(xin, params, use_pallas=True))
    out = jax.block_until_ready(forward(x))

    b_out = bandwidth // 2
    assert out.shape == (batch, channels2, 2 * b_out, 2 * b_out, 2 * b_out), out.shape
    assert out.dtype == jnp.float32
    assert bool(jnp.all(out >= 0.0))  # final ReLU

    # numerical check: Pallas kernels vs a pure-JAX reference using the same spectral packing
    reference = jax.jit(lambda xin: residual_block_forward(xin, params, use_pallas=False))
    ref = jax.block_until_ready(reference(x))
    rel_err = float(jnp.max(jnp.abs(out - ref))) / (float(jnp.max(jnp.abs(ref))) + 1e-6)
    assert rel_err < 5e-3, f"pallas vs reference mismatch: rel err {rel_err}"

    print("KERNEL_OK")
</pallas_src>

<mosaic_0001>
module attributes {stable_mosaic.version = 11 : i64} {
  func.func @_spectral_mm_kernel(%arg0: i32, %arg1: memref<16x256xf32, #tpu.memory_space<vmem>>, %arg2: memref<256x512xf32, #tpu.memory_space<vmem>>, %arg3: memref<16x512xf32, #tpu.memory_space<vmem>>) attributes {dimension_semantics = [#tpu.dimension_semantics<parallel>], iteration_bounds = array<i64: 1>, scalar_prefetch = 0 : i64, scratch_operands = 0 : i64, tpu.core_type = #tpu.core_type<tc>, window_params = [{pipeline_mode = #tpu.pipeline_mode<synchronous>, transform_indices = @transform_0, window_bounds = array<i64: 16, 256>}, {transform_indices = @transform_1, window_bounds = array<i64: 256, 512>}, {transform_indices = @transform_2, window_bounds = array<i64: 16, 512>}]} {
    %c0 = arith.constant 0 : index
    %c0_0 = arith.constant 0 : index
    %0 = vector.load %arg1[%c0, %c0_0] : memref<16x256xf32, #tpu.memory_space<vmem>>, vector<16x256xf32>
    %c0_1 = arith.constant 0 : index
    %c0_2 = arith.constant 0 : index
    %1 = vector.load %arg2[%c0_1, %c0_2] : memref<256x512xf32, #tpu.memory_space<vmem>>, vector<256x512xf32>
    %cst = arith.constant dense<0.000000e+00> : vector<16x512xf32>
    %2 = tpu.matmul %0, %1, %cst {dimension_numbers = #tpu.dot_dimension_numbers<[1], [0], [0], [1], [0, 0, 1, 1], [], []>} : vector<16x256xf32>, vector<256x512xf32>, vector<16x512xf32> -> vector<16x512xf32>
    %c0_3 = arith.constant 0 : index
    %c0_4 = arith.constant 0 : index
    %3 = vector.load %arg3[%c0_3, %c0_4] : memref<16x512xf32, #tpu.memory_space<vmem>>, vector<16x512xf32>
    tpu.vector_store %arg3[%c0_3, %c0_4], %2 {strides = array<i32>} : memref<16x512xf32, #tpu.memory_space<vmem>>, vector<16x512xf32>,
    return
  }
  func.func @transform_0(%arg0: i32) -> (i32, i32) {
    %c0_i32 = arith.constant 0 : i32
    %c0_i32_0 = arith.constant 0 : i32
    %c0_i32_1 = arith.constant 0 : i32
    return %c0_i32, %c0_i32_0 : i32, i32
  }
  func.func @transform_1(%arg0: i32) -> (i32, i32) {
    %c0_i32 = arith.constant 0 : i32
    %c0_i32_0 = arith.constant 0 : i32
    return %c0_i32, %arg0 : i32, i32
  }
  func.func @transform_2(%arg0: i32) -> (i32, i32) {
    %c0_i32 = arith.constant 0 : i32
    %c0_i32_0 = arith.constant 0 : i32
    return %c0_i32, %arg0 : i32, i32
  }
}

module attributes {stable_mosaic.version = 11 : i64} {
  func.func @_bias_relu_kernel(%arg0: i32, %arg1: memref<2x2048xf32, #tpu.memory_space<vmem>>, %arg2: memref<1x2048xf32, #tpu.memory_space<vmem>>, %arg3: memref<2x2048xf32, #tpu.memory_space<vmem>>) attributes {dimension_semantics = [#tpu.dimension_semantics<parallel>], iteration_bounds = array<i64: 1>, scalar_prefetch = 0 : i64, scratch_operands = 0 : i64, tpu.core_type = #tpu.core_type<tc>, window_params = [{transform_indices = @transform_0, window_bounds = array<i64: 2, 2048>}, {transform_indices = @transform_1, window_bounds = array<i64: 1, 2048>}, {transform_indices = @transform_2, window_bounds = array<i64: 2, 2048>}]} {
    %c0 = arith.constant 0 : index
    %c0_0 = arith.constant 0 : index
    %0 = vector.load %arg1[%c0, %c0_0] : memref<2x2048xf32, #tpu.memory_space<vmem>>, vector<2x2048xf32>
    %c0_1 = arith.constant 0 : index
    %c0_2 = arith.constant 0 : index
    %1 = vector.load %arg2[%c0_1, %c0_2] : memref<1x2048xf32, #tpu.memory_space<vmem>>, vector<1x2048xf32>
    %2 = vector.broadcast %1 : vector<1x2048xf32> to vector<2x2048xf32>
    %3 = arith.addf %0, %2 : vector<2x2048xf32>
    %cst = arith.constant 0.000000e+00 : f32
    %4 = vector.broadcast %cst : f32 to vector<2x2048xf32>
    %5 = arith.maximumf %3, %4 : vector<2x2048xf32>
    %c0_3 = arith.constant 0 : index
    %c0_4 = arith.constant 0 : index
    %6 = vector.load %arg3[%c0_3, %c0_4] : memref<2x2048xf32, #tpu.memory_space<vmem>>, vector<2x2048xf32>
    tpu.vector_store %arg3[%c0_3, %c0_4], %5 {strides = array<i32>} : memref<2x2048xf32, #tpu.memory_space<vmem>>, vector<2x2048xf32>,
    return
  }
  func.func @transform_0(%arg0: i32) -> (i32, i32) {
    %c0_i32 = arith.constant 0 : i32
    %c0_i32_0 = arith.constant 0 : i32
    return %c0_i32, %arg0 : i32, i32
  }
  func.func @transform_1(%arg0: i32) -> (i32, i32) {
    %c0_i32 = arith.constant 0 : i32
    %c0_i32_0 = arith.constant 0 : i32
    return %c0_i32, %arg0 : i32, i32
  }
  func.func @transform_2(%arg0: i32) -> (i32, i32) {
    %c0_i32 = arith.constant 0 : i32
    %c0_i32_0 = arith.constant 0 : i32
    return %c0_i32, %arg0 : i32, i32
  }
}

module attributes {stable_mosaic.version = 11 : i64} {
  func.func @_spectral_mm_kernel(%arg0: i32, %arg1: memref<8x256xf32, #tpu.memory_space<vmem>>, %arg2: memref<256x256xf32, #tpu.memory_space<vmem>>, %arg3: memref<8x256xf32, #tpu.memory_space<vmem>>) attributes {dimension_semantics = [#tpu.dimension_semantics<parallel>], iteration_bounds = array<i64: 1>, scalar_prefetch = 0 : i64, scratch_operands = 0 : i64, tpu.core_type = #tpu.core_type<tc>, window_params = [{pipeline_mode = #tpu.pipeline_mode<synchronous>, transform_indices = @transform_0, window_bounds = array<i64: 8, 256>}, {transform_indices = @transform_1, window_bounds = array<i64: 256, 256>}, {transform_indices = @transform_2, window_bounds = array<i64: 8, 256>}]} {
    %c0 = arith.constant 0 : index
    %c0_0 = arith.constant 0 : index
    %0 = vector.load %arg1[%c0, %c0_0] : memref<8x256xf32, #tpu.memory_space<vmem>>, vector<8x256xf32>
    %c0_1 = arith.constant 0 : index
    %c0_2 = arith.constant 0 : index
    %1 = vector.load %arg2[%c0_1, %c0_2] : memref<256x256xf32, #tpu.memory_space<vmem>>, vector<256x256xf32>
    %cst = arith.constant dense<0.000000e+00> : vector<8x256xf32>
    %2 = tpu.matmul %0, %1, %cst {dimension_numbers = #tpu.dot_dimension_numbers<[1], [0], [0], [1], [0, 0, 1, 1], [], []>} : vector<8x256xf32>, vector<256x256xf32>, vector<8x256xf32> -> vector<8x256xf32>
    %c0_3 = arith.constant 0 : index
    %c0_4 = arith.constant 0 : index
    %3 = vector.load %arg3[%c0_3, %c0_4] : memref<8x256xf32, #tpu.memory_space<vmem>>, vector<8x256xf32>
    tpu.vector_store %arg3[%c0_3, %c0_4], %2 {strides = array<i32>} : memref<8x256xf32, #tpu.memory_space<vmem>>, vector<8x256xf32>,
    return
  }
  func.func @transform_0(%arg0: i32) -> (i32, i32) {
    %c0_i32 = arith.constant 0 : i32
    %c0_i32_0 = arith.constant 0 : i32
    %c0_i32_1 = arith.constant 0 : i32
    return %c0_i32, %c0_i32_0 : i32, i32
  }
  func.func @transform_1(%arg0: i32) -> (i32, i32) {
    %c0_i32 = arith.constant 0 : i32
    %c0_i32_0 = arith.constant 0 : i32
    return %c0_i32, %arg0 : i32, i32
  }
  func.func @transform_2(%arg0: i32) -> (i32, i32) {
    %c0_i32 = arith.constant 0 : i32
    %c0_i32_0 = arith.constant 0 : i32
    return %c0_i32, %arg0 : i32, i32
  }
}

module attributes {stable_mosaic.version = 11 : i64} {
  func.func @_add_bias_relu_kernel(%arg0: i32, %arg1: memref<2x512xf32, #tpu.memory_space<vmem>>, %arg2: memref<2x512xf32, #tpu.memory_space<vmem>>, %arg3: memref<1x512xf32, #tpu.memory_space<vmem>>, %arg4: memref<2x512xf32, #tpu.memory_space<vmem>>) attributes {dimension_semantics = [#tpu.dimension_semantics<parallel>], iteration_bounds = array<i64: 1>, scalar_prefetch = 0 : i64, scratch_operands = 0 : i64, tpu.core_type = #tpu.core_type<tc>, window_params = [{transform_indices = @transform_0, window_bounds = array<i64: 2, 512>}, {transform_indices = @transform_1, window_bounds = array<i64: 2, 512>}, {transform_indices = @transform_2, window_bounds = array<i64: 1, 512>}, {transform_indices = @transform_3, window_bounds = array<i64: 2, 512>}]} {
    %c0 = arith.constant 0 : index
    %c0_0 = arith.constant 0 : index
    %0 = vector.load %arg1[%c0, %c0_0] : memref<2x512xf32, #tpu.memory_space<vmem>>, vector<2x512xf32>
    %c0_1 = arith.constant 0 : index
    %c0_2 = arith.constant 0 : index
    %1 = vector.load %arg2[%c0_1, %c0_2] : memref<2x512xf32, #tpu.memory_space<vmem>>, vector<2x512xf32>
    %2 = arith.addf %0, %1 : vector<2x512xf32>
    %c0_3 = arith.constant 0 : index
    %c0_4 = arith.constant 0 : index
    %3 = vector.load %arg3[%c0_3, %c0_4] : memref<1x512xf32, #tpu.memory_space<vmem>>, vector<1x512xf32>
    %4 = vector.broadcast %3 : vector<1x512xf32> to vector<2x512xf32>
    %5 = arith.addf %2, %4 : vector<2x512xf32>
    %cst = arith.constant 0.000000e+00 : f32
    %6 = vector.broadcast %cst : f32 to vector<2x512xf32>
    %7 = arith.maximumf %5, %6 : vector<2x512xf32>
    %c0_5 = arith.constant 0 : index
    %c0_6 = arith.constant 0 : index
    %8 = vector.load %arg4[%c0_5, %c0_6] : memref<2x512xf32, #tpu.memory_space<vmem>>, vector<2x512xf32>
    tpu.vector_store %arg4[%c0_5, %c0_6], %7 {strides = array<i32>} : memref<2x512xf32, #tpu.memory_space<vmem>>, vector<2x512xf32>,
    return
  }
  func.func @transform_0(%arg0: i32) -> (i32, i32) {
    %c0_i32 = arith.constant 0 : i32
    %c0_i32_0 = arith.constant 0 : i32
    return %c0_i32, %arg0 : i32, i32
  }
  func.func @transform_1(%arg0: i32) -> (i32, i32) {
    %c0_i32 = arith.constant 0 : i32
    %c0_i32_0 = arith.constant 0 : i32
    return %c0_i32, %arg0 : i32, i32
  }
  func.func @transform_2(%arg0: i32) -> (i32, i32) {
    %c0_i32 = arith.constant 0 : i32
    %c0_i32_0 = arith.constant 0 : i32
    return %c0_i32, %arg0 : i32, i32
  }
  func.func @transform_3(%arg0: i32) -> (i32, i32) {
    %c0_i32 = arith.constant 0 : i32
    %c0_i32_0 = arith.constant 0 : i32
    return %c0_i32, %arg0 : i32, i32
  }
}

</mosaic_0001>

<llo_original>
// kernel: _lambda_.4
$region0: #{_lambda_.4}
  #allocation0 [shape = 'u32[]', space=smem, size = 0x4, offset = 0x4, fixed_abs, tag = 'smem constant byte address 0x4 - core index']
  #allocation1 [shape = 'u32[144,128]{1,0:T(1,128)}', space=vmem, size = 0x12000, scoped, tag = 'internal scratch']
  %s0 = inlined_call_operand.vmem [shape: f32[16,256], index: 0, kind: input, shape index: {}]
  %s1 = inlined_call_operand.vmem [shape: f32[256,512], index: 1, kind: input, shape index: {}]
  %s2 = inlined_call_operand.vmem [shape: f32[16,512], index: 2, kind: output, shape index: {}]
  %s3 = sld [smem:[#allocation0]]
  $region18: #{_lambda_.4} parent=0
    _
  %s5 = ssub.s32 1, %s3
  %s6 = scalar_select 0, %s5, %s3
  // Predicated region
  $region2: #{_lambda_.4} parent=0 // pred_check
    _
  $region3: #{_lambda_.4} parent=0 // pred_check_branch
    %8 = sbr.rel (0) target = $region5
  $region4: #{_lambda_.4} parent=0 // pred_region
    _
  $region5: #{_lambda_.4} parent=0 // pred_fallthru
    _
  // Predicated region
  $region6: #{_lambda_.4} parent=0 // pred_check
    _
  $region7: #{_lambda_.4} parent=0 // pred_check_branch
    %10 = sbr.rel (0) target = $region9
  $region8: #{_lambda_.4} parent=0 // pred_region
    _
  $region9: #{_lambda_.4} parent=0 // pred_fallthru
    _
  %v11 = vld [vmem:[%s0] sm:$0xff]
  %v12 = vld [vmem:[%s0 + $0x8] sm:$0xff]
  %v13 = vld [vmem:[%s0 + $0x10] sm:$0xff]
  %v14 = vld [vmem:[%s0 + $0x18] sm:$0xff]
  %v15 = vld [vmem:[%s1] sm:$0xff]
  %v16 = vld [vmem:[%s1 + $0x8] sm:$0xff]
  %v17 = vld [vmem:[%s1 + $0x10] sm:$0xff]
  %v18 = vld [vmem:[%s1 + $0x18] sm:$0xff]
  %v19 = vld [vmem:[%s1 + $0x20] sm:$0xff]
  %v20 = vld [vmem:[%s1 + $0x28] sm:$0xff]
  %v21 = vld [vmem:[%s1 + $0x30] sm:$0xff]
  %v22 = vld [vmem:[%s1 + $0x38] sm:$0xff]
  %v23 = vld [vmem:[%s1 + $0x40] sm:$0xff]
  %v24 = vld [vmem:[%s1 + $0x48] sm:$0xff]
  %v25 = vld [vmem:[%s1 + $0x50] sm:$0xff]
  %v26 = vld [vmem:[%s1 + $0x58] sm:$0xff]
  %v27 = vld [vmem:[%s1 + $0x60] sm:$0xff]
  %v28 = vld [vmem:[%s1 + $0x68] sm:$0xff]
  %v29 = vld [vmem:[%s1 + $0x70] sm:$0xff]
  %v30 = vld [vmem:[%s1 + $0x78] sm:$0xff]
  %v31 = vld [vmem:[%s1 + $0x80] sm:$0xff]
  %v32 = vld [vmem:[%s1 + $0x88] sm:$0xff]
  %v33 = vld [vmem:[%s1 + $0x90] sm:$0xff]
  %v34 = vld [vmem:[%s1 + $0x98] sm:$0xff]
  %v35 = vld [vmem:[%s1 + $0xa0] sm:$0xff]
  %v36 = vld [vmem:[%s1 + $0xa8] sm:$0xff]
  %v37 = vld [vmem:[%s1 + $0xb0] sm:$0xff]
  %v38 = vld [vmem:[%s1 + $0xb8] sm:$0xff]
  %v39 = vld [vmem:[%s1 + $0xc0] sm:$0xff]
  %v40 = vld [vmem:[%s1 + $0xc8] sm:$0xff]
  %v41 = vld [vmem:[%s1 + $0xd0] sm:$0xff]
  %v42 = vld [vmem:[%s1 + $0xd8] sm:$0xff]
  %v43 = vld [vmem:[%s1 + $0xe0] sm:$0xff]
  %v44 = vld [vmem:[%s1 + $0xe8] sm:$0xff]
  %v45 = vld [vmem:[%s1 + $0xf0] sm:$0xff]
  %v46 = vld [vmem:[%s1 + $0xf8] sm:$0xff]
  %v47 = vld [vmem:[%s1 + $0x100] sm:$0xff]
  %v48 = vld [vmem:[%s1 + $0x108] sm:$0xff]
  %v49 = vld [vmem:[%s1 + $0x110] sm:$0xff]
  %v50 = vld [vmem:[%s1 + $0x118] sm:$0xff]
  %v51 = vld [vmem:[%s1 + $0x120] sm:$0xff]
  %v52 = vld [vmem:[%s1 + $0x128] sm:$0xff]
  %v53 = vld [vmem:[%s1 + $0x130] sm:$0xff]
  %v54 = vld [vmem:[%s1 + $0x138] sm:$0xff]
  %v55 = vld [vmem:[%s1 + $0x140] sm:$0xff]
  %v56 = vld [vmem:[%s1 + $0x148] sm:$0xff]
  %v57 = vld [vmem:[%s1 + $0x150] sm:$0xff]
  %v58 = vld [vmem:[%s1 + $0x158] sm:$0xff]
  %v59 = vld [vmem:[%s1 + $0x160] sm:$0xff]
  %v60 = vld [vmem:[%s1 + $0x168] sm:$0xff]
  %v61 = vld [vmem:[%s1 + $0x170] sm:$0xff]
  %v62 = vld [vmem:[%s1 + $0x178] sm:$0xff]
  %v63 = vld [vmem:[%s1 + $0x180] sm:$0xff]
  %v64 = vld [vmem:[%s1 + $0x188] sm:$0xff]
  %v65 = vld [vmem:[%s1 + $0x190] sm:$0xff]
  %v66 = vld [vmem:[%s1 + $0x198] sm:$0xff]
  %v67 = vld [vmem:[%s1 + $0x1a0] sm:$0xff]
  %v68 = vld [vmem:[%s1 + $0x1a8] sm:$0xff]
  %v69 = vld [vmem:[%s1 + $0x1b0] sm:$0xff]
  %v70 = vld [vmem:[%s1 + $0x1b8] sm:$0xff]
  %v71 = vld [vmem:[%s1 + $0x1c0] sm:$0xff]
  %v72 = vld [vmem:[%s1 + $0x1c8] sm:$0xff]
  %v73 = vld [vmem:[%s1 + $0x1d0] sm:$0xff]
  %v74 = vld [vmem:[%s1 + $0x1d8] sm:$0xff]
  %v75 = vld [vmem:[%s1 + $0x1e0] sm:$0xff]
  %v76 = vld [vmem:[%s1 + $0x1e8] sm:$0xff]
  %v77 = vld [vmem:[%s1 + $0x1f0] sm:$0xff]
  %v78 = vld [vmem:[%s1 + $0x1f8] sm:$0xff]
  %v79 = vld [vmem:[%s1 + $0x200] sm:$0xff]
  %v80 = vld [vmem:[%s1 + $0x208] sm:$0xff]
  %v81 = vld [vmem:[%s1 + $0x210] sm:$0xff]
  %v82 = vld [vmem:[%s1 + $0x218] sm:$0xff]
  %v83 = vld [vmem:[%s1 + $0x220] sm:$0xff]
  %v84 = vld [vmem:[%s1 + $0x228] sm:$0xff]
  %v85 = vld [vmem:[%s1 + $0x230] sm:$0xff]
  %v86 = vld [vmem:[%s1 + $0x238] sm:$0xff]
  %v87 = vld [vmem:[%s1 + $0x240] sm:$0xff]
  %v88 = vld [vmem:[%s1 + $0x248] sm:$0xff]
  %v89 = vld [vmem:[%s1 + $0x250] sm:$0xff]
  %v90 = vld [vmem:[%s1 + $0x258] sm:$0xff]
  %v91 = vld [vmem:[%s1 + $0x260] sm:$0xff]
  %v92 = vld [vmem:[%s1 + $0x268] sm:$0xff]
  %v93 = vld [vmem:[%s1 + $0x270] sm:$0xff]
  %v94 = vld [vmem:[%s1 + $0x278] sm:$0xff]
  %v95 = vld [vmem:[%s1 + $0x280] sm:$0xff]
  %v96 = vld [vmem:[%s1 + $0x288] sm:$0xff]
  %v97 = vld [vmem:[%s1 + $0x290] sm:$0xff]
  %v98 = vld [vmem:[%s1 + $0x298] sm:$0xff]
  %v99 = vld [vmem:[%s1 + $0x2a0] sm:$0xff]
  %v100 = vld [vmem:[%s1 + $0x2a8] sm:$0xff]
  %v101 = vld [vmem:[%s1 + $0x2b0] sm:$0xff]
  %v102 = vld [vmem:[%s1 + $0x2b8] sm:$0xff]
  %v103 = vld [vmem:[%s1 + $0x2c0] sm:$0xff]
  %v104 = vld [vmem:[%s1 + $0x2c8] sm:$0xff]
  %v105 = vld [vmem:[%s1 + $0x2d0] sm:$0xff]
  %v106 = vld [vmem:[%s1 + $0x2d8] sm:$0xff]
  %v107 = vld [vmem:[%s1 + $0x2e0] sm:$0xff]
  %v108 = vld [vmem:[%s1 + $0x2e8] sm:$0xff]
  %v109 = vld [vmem:[%s1 + $0x2f0] sm:$0xff]
  %v110 = vld [vmem:[%s1 + $0x2f8] sm:$0xff]
  %v111 = vld [vmem:[%s1 + $0x300] sm:$0xff]
  %v112 = vld [vmem:[%s1 + $0x308] sm:$0xff]
  %v113 = vld [vmem:[%s1 + $0x310] sm:$0xff]
  %v114 = vld [vmem:[%s1 + $0x318] sm:$0xff]
  %v115 = vld [vmem:[%s1 + $0x320] sm:$0xff]
  %v116 = vld [vmem:[%s1 + $0x328] sm:$0xff]
  %v117 = vld [vmem:[%s1 + $0x330] sm:$0xff]
  %v118 = vld [vmem:[%s1 + $0x338] sm:$0xff]
  %v119 = vld [vmem:[%s1 + $0x340] sm:$0xff]
  %v120 = vld [vmem:[%s1 + $0x348] sm:$0xff]
  %v121 = vld [vmem:[%s1 + $0x350] sm:$0xff]
  %v122 = vld [vmem:[%s1 + $0x358] sm:$0xff]
  %v123 = vld [vmem:[%s1 + $0x360] sm:$0xff]
  %v124 = vld [vmem:[%s1 + $0x368] sm:$0xff]
  %v125 = vld [vmem:[%s1 + $0x370] sm:$0xff]
  %v126 = vld [vmem:[%s1 + $0x378] sm:$0xff]
  %v127 = vld [vmem:[%s1 + $0x380] sm:$0xff]
  %v128 = vld [vmem:[%s1 + $0x388] sm:$0xff]
  %v129 = vld [vmem:[%s1 + $0x390] sm:$0xff]
  %v130 = vld [vmem:[%s1 + $0x398] sm:$0xff]
  %v131 = vld [vmem:[%s1 + $0x3a0] sm:$0xff]
  %v132 = vld [vmem:[%s1 + $0x3a8] sm:$0xff]
  %v133 = vld [vmem:[%s1 + $0x3b0] sm:$0xff]
  %v134 = vld [vmem:[%s1 + $0x3b8] sm:$0xff]
  %v135 = vld [vmem:[%s1 + $0x3c0] sm:$0xff]
  %v136 = vld [vmem:[%s1 + $0x3c8] sm:$0xff]
  %v137 = vld [vmem:[%s1 + $0x3d0] sm:$0xff]
  %v138 = vld [vmem:[%s1 + $0x3d8] sm:$0xff]
  %v139 = vld [vmem:[%s1 + $0x3e0] sm:$0xff]
  %v140 = vld [vmem:[%s1 + $0x3e8] sm:$0xff]
  %v141 = vld [vmem:[%s1 + $0x3f0] sm:$0xff]
  %v142 = vld [vmem:[%s1 + $0x3f8] sm:$0xff]
  %143 = vmatprep.subr.mxu0 %v76
  %144 = vmatpush1.msra.mxu0 %v75
  %145 = vmatprep.subr.mxu0 %v72
  %146 = vmatpush1.msra.mxu0 %v71
  %147 = vmatprep.subr.mxu0 %v68
  %148 = vmatpush1.msra.mxu0 %v67
  %149 = vmatprep.subr.mxu0 %v64
  %150 = vmatpush1.msra.mxu0 %v63
  %151 = vmatprep.subr.mxu0 %v60
  %152 = vmatpush1.msra.mxu0 %v59
  %153 = vmatprep.subr.mxu0 %v56
  %154 = vmatpush1.msra.mxu0 %v55
  %155 = vmatprep.subr.mxu0 %v52
  %156 = vmatpush1.msra.mxu0 %v51
  %157 = vmatprep.subr.mxu0 %v48
  %158 = vmatpush1.msra.mxu0 %v47
  %159 = vmatprep.subr.mxu0 %v44
  %160 = vmatpush1.msra.mxu0 %v43
  %161 = vmatprep.subr.mxu0 %v40
  %162 = vmatpush1.msra.mxu0 %v39
  %163 = vmatprep.subr.mxu0 %v36
  %164 = vmatpush1.msra.mxu0 %v35
  %165 = vmatprep.subr.mxu0 %v32
  %166 = vmatpush1.msra.mxu0 %v31
  %167 = vmatprep.subr.mxu0 %v28
  %168 = vmatpush1.msra.mxu0 %v27
  %169 = vmatprep.subr.mxu0 %v24
  %170 = vmatpush1.msra.mxu0 %v23
  %171 = vmatprep.subr.mxu0 %v20
  %172 = vmatpush1.msra.mxu0 %v19
  %173 = vmatprep.subr.mxu0 %v16
  %174 = vmatpush1.msra.mxu0 %v15
  %175 = vmatprep.subr.mxu0 %v140
  %176 = vmatpush2.msra.mxu0 %v139
  %177 = vmatprep.subr.mxu0 %v136
  %178 = vmatpush2.msra.mxu0 %v135
  %179 = vmatprep.subr.mxu0 %v132
  %180 = vmatpush2.msra.mxu0 %v131
  %181 = vmatprep.subr.mxu0 %v128
  %182 = vmatpush2.msra.mxu0 %v127
  %183 = vmatprep.subr.mxu0 %v124
  %184 = vmatpush2.msra.mxu0 %v123
  %185 = vmatprep.subr.mxu0 %v120
  %186 = vmatpush2.msra.mxu0 %v119
  %187 = vmatprep.subr.mxu0 %v116
  %188 = vmatpush2.msra.mxu0 %v115
  %189 = vmatprep.subr.mxu0 %v112
  %190 = vmatpush2.msra.mxu0 %v111
  %191 = vmatprep.subr.mxu0 %v108
  %192 = vmatpush2.msra.mxu0 %v107
  %193 = vmatprep.subr.mxu0 %v104
  %194 = vmatpush2.msra.mxu0 %v103
  %195 = vmatprep.subr.mxu0 %v100
  %196 = vmatpush2.msra.mxu0 %v99
  %197 = vmatprep.subr.mxu0 %v96
  %198 = vmatpush2.msra.mxu0 %v95
  %199 = vmatprep.subr.mxu0 %v92
  %200 = vmatpush2.msra.mxu0 %v91
  %201 = vmatprep.subr.mxu0 %v88
  %202 = vmatpush2.msra.mxu0 %v87
  %203 = vmatprep.subr.mxu0 %v84
  %204 = vmatpush2.msra.mxu0 %v83
  %205 = vmatprep.subr.mxu0 %v80
  %206 = vmatpush2.msra.mxu0 %v79
  %207 = vmatprep.mubr.f32.mxu0 %v12
  %208 = vmatmul.mubr.f32.gmra.mxu0 %v11
  %v209 = vpop.f32.mrf.mxu0
  %v210 = vadd.f32 0.0, %v209
  %v211 = vpop.f32.mrf.mxu0
  %v212 = vadd.f32 0.0, %v211
  %213 = vmatprep.mubr.f32.mxu0 %v14
  %214 = vmatmul.mubr.f32.gmra.mxu0 %v13
  %v215 = vpop.f32.mrf.mxu0
  %v216 = vadd.f32 0.0, %v215
  %v217 = vpop.f32.mrf.mxu0
  %v218 = vadd.f32 0.0, %v217
  %219 = vdwg.mxu0
  %220 = vmatprep.subr.mxu0 %v78
  %221 = vmatpush1.msra.mxu0 %v77
  %222 = vmatprep.subr.mxu0 %v74
  %223 = vmatpush1.msra.mxu0 %v73
  %224 = vmatprep.subr.mxu0 %v70
  %225 = vmatpush1.msra.mxu0 %v69
  %226 = vmatprep.subr.mxu0 %v66
  %227 = vmatpush1.msra.mxu0 %v65
  %228 = vmatprep.subr.mxu0 %v62
  %229 = vmatpush1.msra.mxu0 %v61
  %230 = vmatprep.subr.mxu0 %v58
  %231 = vmatpush1.msra.mxu0 %v57
  %232 = vmatprep.subr.mxu0 %v54
  %233 = vmatpush1.msra.mxu0 %v53
  %234 = vmatprep.subr.mxu0 %v50
  %235 = vmatpush1.msra.mxu0 %v49
  %236 = vmatprep.subr.mxu0 %v46
  %237 = vmatpush1.msra.mxu0 %v45
  %238 = vmatprep.subr.mxu0 %v42
  %239 = vmatpush1.msra.mxu0 %v41
  %240 = vmatprep.subr.mxu0 %v38
  %241 = vmatpush1.msra.mxu0 %v37
  %242 = vmatprep.subr.mxu0 %v34
  %243 = vmatpush1.msra.mxu0 %v33
  %244 = vmatprep.subr.mxu0 %v30
  %245 = vmatpush1.msra.mxu0 %v29
  %246 = vmatprep.subr.mxu0 %v26
  %247 = vmatpush1.msra.mxu0 %v25
  %248 = vmatprep.subr.mxu0 %v22
  %249 = vmatpush1.msra.mxu0 %v21
  %250 = vmatprep.subr.mxu0 %v18
  %251 = vmatpush1.msra.mxu0 %v17
  %252 = vmatprep.subr.mxu0 %v142
  %253 = vmatpush2.msra.mxu0 %v141
  %254 = vmatprep.subr.mxu0 %v138
  %255 = vmatpush2.msra.mxu0 %v137
  %256 = vmatprep.subr.mxu0 %v134
  %257 = vmatpush2.msra.mxu0 %v133
  %258 = vmatprep.subr.mxu0 %v130
  %259 = vmatpush2.msra.mxu0 %v129
  %260 = vmatprep.subr.mxu0 %v126
  %261 = vmatpush2.msra.mxu0 %v125
  %262 = vmatprep.subr.mxu0 %v122
  %263 = vmatpush2.msra.mxu0 %v121
  %264 = vmatprep.subr.mxu0 %v118
  %265 = vmatpush2.msra.mxu0 %v117
  %266 = vmatprep.subr.mxu0 %v114
  %267 = vmatpush2.msra.mxu0 %v113
  %268 = vmatprep.subr.mxu0 %v110
  %269 = vmatpush2.msra.mxu0 %v109
  %270 = vmatprep.subr.mxu0 %v106
  %271 = vmatpush2.msra.mxu0 %v105
  %272 = vmatprep.subr.mxu0 %v102
  %273 = vmatpush2.msra.mxu0 %v101
  %274 = vmatprep.subr.mxu0 %v98
  %275 = vmatpush2.msra.mxu0 %v97
  %276 = vmatprep.subr.mxu0 %v94
  %277 = vmatpush2.msra.mxu0 %v93
  %278 = vmatprep.subr.mxu0 %v90
  %279 = vmatpush2.msra.mxu0 %v89
  %280 = vmatprep.subr.mxu0 %v86
  %281 = vmatpush2.msra.mxu0 %v85
  %282 = vmatprep.subr.mxu0 %v82
  %283 = vmatpush2.msra.mxu0 %v81
  %284 = vmatprep.mubr.f32.mxu0 %v12
  %285 = vmatmul.mubr.f32.gmra.mxu0 %v11
  %v286 = vpop.f32.mrf.mxu0
  %v287 = vadd.f32 0.0, %v286
  %v288 = vpop.f32.mrf.mxu0
  %v289 = vadd.f32 0.0, %v288
  %290 = vmatprep.mubr.f32.mxu0 %v14
  %291 = vmatmul.mubr.f32.gmra.mxu0 %v13
  %v292 = vpop.f32.mrf.mxu0
  %v293 = vadd.f32 0.0, %v292
  %v294 = vpop.f32.mrf.mxu0
  %v295 = vadd.f32 0.0, %v294
  %296 = vdwg.mxu0
  %297 = vst [vmem:[%s2] sm:$0xff] %v210
  %298 = vst [vmem:[%s2 + $0x8] sm:$0xff] %v212
  %299 = vst [vmem:[%s2 + $0x10] sm:$0xff] %v287
  %300 = vst [vmem:[%s2 + $0x18] sm:$0xff] %v289
  %301 = vst [vmem:[%s2 + $0x20] sm:$0xff] %v216
  %302 = vst [vmem:[%s2 + $0x28] sm:$0xff] %v218
  %303 = vst [vmem:[%s2 + $0x30] sm:$0xff] %v293
  %304 = vst [vmem:[%s2 + $0x38] sm:$0xff] %v295
  // Predicated region
  $region10: #{_lambda_.4} parent=0 // pred_check
    _
  $region11: #{_lambda_.4} parent=0 // pred_check_branch
    %306 = sbr.rel (0) target = $region13
  $region12: #{_lambda_.4} parent=0 // pred_region
    _
  $region13: #{_lambda_.4} parent=0 // pred_fallthru
    _
  // Predicated region
  $region14: #{_lambda_.4} parent=0 // pred_check
    _
  $region15: #{_lambda_.4} parent=0 // pred_check_branch
    %308 = sbr.rel (0) target = $region17
  $region16: #{_lambda_.4} parent=0 // pred_region
    _
  $region17: #{_lambda_.4} parent=0 // pred_fallthru
    _

// kernel: _lambda_.5
$region0: #{_lambda_.5}
  #allocation0 [shape = 'u32[]', space=smem, size = 0x4, offset = 0x4, fixed_abs, tag = 'smem constant byte address 0x4 - core index']
  #allocation1 [shape = 'u32[144,128]{1,0:T(1,128)}', space=vmem, size = 0x12000, scoped, tag = 'internal scratch']
  %s0 = inlined_call_operand.vmem [shape: f32[2,2048], index: 0, kind: input, shape index: {}]
  %s1 = inlined_call_operand.vmem [shape: f32[1,2048], index: 1, kind: input, shape index: {}]
  %s2 = inlined_call_operand.vmem [shape: f32[2,2048], index: 2, kind: output, shape index: {}]
  %s3 = sld [smem:[#allocation0]]
  $region18: #{_lambda_.5} parent=0
    _
  %s5 = ssub.s32 1, %s3
  %s6 = scalar_select 0, %s5, %s3
  // Predicated region
  $region2: #{_lambda_.5} parent=0 // pred_check
    _
  $region3: #{_lambda_.5} parent=0 // pred_check_branch
    %8 = sbr.rel (0) target = $region5
  $region4: #{_lambda_.5} parent=0 // pred_region
    _
  $region5: #{_lambda_.5} parent=0 // pred_fallthru
    _
  // Predicated region
  $region6: #{_lambda_.5} parent=0 // pred_check
    _
  $region7: #{_lambda_.5} parent=0 // pred_check_branch
    %10 = sbr.rel (0) target = $region9
  $region8: #{_lambda_.5} parent=0 // pred_region
    _
  $region9: #{_lambda_.5} parent=0 // pred_fallthru
    _
  %v11 = vld [vmem:[%s0] sm:$0xff]
  %v12 = vld [vmem:[%s0 + $0x8] sm:$0xff]
  %v13 = vld [vmem:[%s0 + $0x10] sm:$0xff]
  %v14 = vld [vmem:[%s0 + $0x18] sm:$0xff]
  %v15 = vld [vmem:[%s1] sm:$0xff]
  %v16 = vld [vmem:[%s1 + $0x8] sm:$0xff]
  %v19 = vlaneseq
  %v20 = vshrl.u32 %v19, 7
  %v21 = vsub.s32 0, %v20
  %v22 = vrot.slane %v15, %v21
  %v23 = vlaneseq
  %v24 = vshrl.u32 %v23, 7
  %v25 = vsub.s32 1, %v24
  %v26 = vrot.slane %v15, %v25
  %v27 = vlaneseq
  %v28 = vshrl.u32 %v27, 7
  %v29 = vsub.s32 2, %v28
  %v30 = vrot.slane %v15, %v29
  %v31 = vlaneseq
  %v32 = vshrl.u32 %v31, 7
  %v33 = vsub.s32 3, %v32
  %v34 = vrot.slane %v15, %v33
  %v35 = vlaneseq
  %v36 = vshrl.u32 %v35, 7
  %v37 = vsub.s32 4, %v36
  %v38 = vrot.slane %v15, %v37
  %v39 = vlaneseq
  %v40 = vshrl.u32 %v39, 7
  %v41 = vsub.s32 5, %v40
  %v42 = vrot.slane %v15, %v41
  %v43 = vlaneseq
  %v44 = vshrl.u32 %v43, 7
  %v45 = vsub.s32 6, %v44
  %v46 = vrot.slane %v15, %v45
  %v47 = vlaneseq
  %v48 = vshrl.u32 %v47, 7
  %v49 = vsub.s32 7, %v48
  %v50 = vrot.slane %v15, %v49
  %v51 = vlaneseq
  %v52 = vshrl.u32 %v51, 7
  %v53 = vsub.s32 0, %v52
  %v54 = vrot.slane %v16, %v53
  %v55 = vlaneseq
  %v56 = vshrl.u32 %v55, 7
  %v57 = vsub.s32 1, %v56
  %v58 = vrot.slane %v16, %v57
  %v59 = vlaneseq
  %v60 = vshrl.u32 %v59, 7
  %v61 = vsub.s32 2, %v60
  %v62 = vrot.slane %v16, %v61
  %v63 = vlaneseq
  %v64 = vshrl.u32 %v63, 7
  %v65 = vsub.s32 3, %v64
  %v66 = vrot.slane %v16, %v65
  %v67 = vlaneseq
  %v68 = vshrl.u32 %v67, 7
  %v69 = vsub.s32 4, %v68
  %v70 = vrot.slane %v16, %v69
  %v71 = vlaneseq
  %v72 = vshrl.u32 %v71, 7
  %v73 = vsub.s32 5, %v72
  %v74 = vrot.slane %v16, %v73
  %v75 = vlaneseq
  %v76 = vshrl.u32 %v75, 7
  %v77 = vsub.s32 6, %v76
  %v78 = vrot.slane %v16, %v77
  %v79 = vlaneseq
  %v80 = vshrl.u32 %v79, 7
  %v81 = vsub.s32 7, %v80
  %v82 = vrot.slane %v16, %v81
  %v83 = vcombine.low %v22, %v26
  %v84 = vcombine.low %v30, %v34
  %v86 = vunpack.c.l.s4 1983009808
  %v87 = vunpack.c.0.s8 %v86
  %v88 = vlaneseq
  %v89 = vshrl.u32 %v88, 7
  %v90 = vsub.s32 %v87, %v89
  %v91 = vrot.slane %v83, %v90
  %v93 = vunpack.c.l.s4 1983009808
  %v94 = vunpack.c.0.s8 %v93
  %v95 = vlaneseq
  %v96 = vshrl.u32 %v95, 7
  %v97 = vsub.s32 %v94, %v96
  %v98 = vrot.slane %v84, %v97
  %v99 = vcombine.low %v91, %v98
  %v100 = vcombine.low %v38, %v42
  %v101 = vcombine.low %v46, %v50
  %v103 = vunpack.c.l.s4 1983009808
  %v104 = vunpack.c.0.s8 %v103
  %v105 = vlaneseq
  %v106 = vshrl.u32 %v105, 7
  %v107 = vsub.s32 %v104, %v106
  %v108 = vrot.slane %v100, %v107
  %v110 = vunpack.c.l.s4 1983009808
  %v111 = vunpack.c.0.s8 %v110
  %v112 = vlaneseq
  %v113 = vshrl.u32 %v112, 7
  %v114 = vsub.s32 %v111, %v113
  %v115 = vrot.slane %v101, %v114
  %v116 = vcombine.low %v108, %v115
  %v117 = vcombine.low %v54, %v58
  %v118 = vcombine.low %v62, %v66
  %v120 = vunpack.c.l.s4 1983009808
  %v121 = vunpack.c.0.s8 %v120
  %v122 = vlaneseq
  %v123 = vshrl.u32 %v122, 7
  %v124 = vsub.s32 %v121, %v123
  %v125 = vrot.slane %v117, %v124
  %v127 = vunpack.c.l.s4 1983009808
  %v128 = vunpack.c.0.s8 %v127
  %v129 = vlaneseq
  %v130 = vshrl.u32 %v129, 7
  %v131 = vsub.s32 %v128, %v130
  %v132 = vrot.slane %v118, %v131
  %v133 = vcombine.low %v125, %v132
  %v134 = vcombine.low %v70, %v74
  %v135 = vcombine.low %v78, %v82
  %v137 = vunpack.c.l.s4 1983009808
  %v138 = vunpack.c.0.s8 %v137
  %v139 = vlaneseq
  %v140 = vshrl.u32 %v139, 7
  %v141 = vsub.s32 %v138, %v140
  %v142 = vrot.slane %v134, %v141
  %v144 = vunpack.c.l.s4 1983009808
  %v145 = vunpack.c.0.s8 %v144
  %v146 = vlaneseq
  %v147 = vshrl.u32 %v146, 7
  %v148 = vsub.s32 %v145, %v147
  %v149 = vrot.slane %v135, %v148
  %v150 = vcombine.low %v142, %v149
  %v155 = vadd.f32 %v11, %v99
  %v156 = vadd.f32 %v12, %v116
  %v157 = vadd.f32 %v13, %v133
  %v158 = vadd.f32 %v14, %v150
  %v159 = vmax.f32 %v155, 0.0
  %v160 = vmax.f32 %v156, 0.0
  %v161 = vmax.f32 %v157, 0.0
  %v162 = vmax.f32 %v158, 0.0
  %163 = vst [vmem:[%s2] sm:$0xff] %v159
  %164 = vst [vmem:[%s2 + $0x8] sm:$0xff] %v160
  %165 = vst [vmem:[%s2 + $0x10] sm:$0xff] %v161
  %166 = vst [vmem:[%s2 + $0x18] sm:$0xff] %v162
  // Predicated region
  $region10: #{_lambda_.5} parent=0 // pred_check
    _
  $region11: #{_lambda_.5} parent=0 // pred_check_branch
    %168 = sbr.rel (0) target = $region13
  $region12: #{_lambda_.5} parent=0 // pred_region
    _
  $region13: #{_lambda_.5} parent=0 // pred_fallthru
    _
  // Predicated region
  $region14: #{_lambda_.5} parent=0 // pred_check
    _
  $region15: #{_lambda_.5} parent=0 // pred_check_branch
    %170 = sbr.rel (0) target = $region17
  $region16: #{_lambda_.5} parent=0 // pred_region
    _
  $region17: #{_lambda_.5} parent=0 // pred_fallthru
    _

// kernel: _lambda_.6
$region0: #{_lambda_.6}
  #allocation0 [shape = 'u32[]', space=smem, size = 0x4, offset = 0x4, fixed_abs, tag = 'smem constant byte address 0x4 - core index']
  #allocation1 [shape = 'u32[144,128]{1,0:T(1,128)}', space=vmem, size = 0x12000, scoped, tag = 'internal scratch']
  %s0 = inlined_call_operand.vmem [shape: f32[8,256], index: 0, kind: input, shape index: {}]
  %s1 = inlined_call_operand.vmem [shape: f32[256,256], index: 1, kind: input, shape index: {}]
  %s2 = inlined_call_operand.vmem [shape: f32[8,256], index: 2, kind: output, shape index: {}]
  %s3 = sld [smem:[#allocation0]]
  $region18: #{_lambda_.6} parent=0
    _
  %s5 = ssub.s32 1, %s3
  %s6 = scalar_select 0, %s5, %s3
  // Predicated region
  $region2: #{_lambda_.6} parent=0 // pred_check
    _
  $region3: #{_lambda_.6} parent=0 // pred_check_branch
    %8 = sbr.rel (0) target = $region5
  $region4: #{_lambda_.6} parent=0 // pred_region
    _
  $region5: #{_lambda_.6} parent=0 // pred_fallthru
    _
  // Predicated region
  $region6: #{_lambda_.6} parent=0 // pred_check
    _
  $region7: #{_lambda_.6} parent=0 // pred_check_branch
    %10 = sbr.rel (0) target = $region9
  $region8: #{_lambda_.6} parent=0 // pred_region
    _
  $region9: #{_lambda_.6} parent=0 // pred_fallthru
    _
  %v11 = vld [vmem:[%s0] sm:$0xff]
  %v12 = vld [vmem:[%s0 + $0x8] sm:$0xff]
  %v13 = vld [vmem:[%s1] sm:$0xff]
  %v14 = vld [vmem:[%s1 + $0x8] sm:$0xff]
  %v15 = vld [vmem:[%s1 + $0x10] sm:$0xff]
  %v16 = vld [vmem:[%s1 + $0x18] sm:$0xff]
  %v17 = vld [vmem:[%s1 + $0x20] sm:$0xff]
  %v18 = vld [vmem:[%s1 + $0x28] sm:$0xff]
  %v19 = vld [vmem:[%s1 + $0x30] sm:$0xff]
  %v20 = vld [vmem:[%s1 + $0x38] sm:$0xff]
  %v21 = vld [vmem:[%s1 + $0x40] sm:$0xff]
  %v22 = vld [vmem:[%s1 + $0x48] sm:$0xff]
  %v23 = vld [vmem:[%s1 + $0x50] sm:$0xff]
  %v24 = vld [vmem:[%s1 + $0x58] sm:$0xff]
  %v25 = vld [vmem:[%s1 + $0x60] sm:$0xff]
  %v26 = vld [vmem:[%s1 + $0x68] sm:$0xff]
  %v27 = vld [vmem:[%s1 + $0x70] sm:$0xff]
  %v28 = vld [vmem:[%s1 + $0x78] sm:$0xff]
  %v29 = vld [vmem:[%s1 + $0x80] sm:$0xff]
  %v30 = vld [vmem:[%s1 + $0x88] sm:$0xff]
  %v31 = vld [vmem:[%s1 + $0x90] sm:$0xff]
  %v32 = vld [vmem:[%s1 + $0x98] sm:$0xff]
  %v33 = vld [vmem:[%s1 + $0xa0] sm:$0xff]
  %v34 = vld [vmem:[%s1 + $0xa8] sm:$0xff]
  %v35 = vld [vmem:[%s1 + $0xb0] sm:$0xff]
  %v36 = vld [vmem:[%s1 + $0xb8] sm:$0xff]
  %v37 = vld [vmem:[%s1 + $0xc0] sm:$0xff]
  %v38 = vld [vmem:[%s1 + $0xc8] sm:$0xff]
  %v39 = vld [vmem:[%s1 + $0xd0] sm:$0xff]
  %v40 = vld [vmem:[%s1 + $0xd8] sm:$0xff]
  %v41 = vld [vmem:[%s1 + $0xe0] sm:$0xff]
  %v42 = vld [vmem:[%s1 + $0xe8] sm:$0xff]
  %v43 = vld [vmem:[%s1 + $0xf0] sm:$0xff]
  %v44 = vld [vmem:[%s1 + $0xf8] sm:$0xff]
  %v45 = vld [vmem:[%s1 + $0x100] sm:$0xff]
  %v46 = vld [vmem:[%s1 + $0x108] sm:$0xff]
  %v47 = vld [vmem:[%s1 + $0x110] sm:$0xff]
  %v48 = vld [vmem:[%s1 + $0x118] sm:$0xff]
  %v49 = vld [vmem:[%s1 + $0x120] sm:$0xff]
  %v50 = vld [vmem:[%s1 + $0x128] sm:$0xff]
  %v51 = vld [vmem:[%s1 + $0x130] sm:$0xff]
  %v52 = vld [vmem:[%s1 + $0x138] sm:$0xff]
  %v53 = vld [vmem:[%s1 + $0x140] sm:$0xff]
  %v54 = vld [vmem:[%s1 + $0x148] sm:$0xff]
  %v55 = vld [vmem:[%s1 + $0x150] sm:$0xff]
  %v56 = vld [vmem:[%s1 + $0x158] sm:$0xff]
  %v57 = vld [vmem:[%s1 + $0x160] sm:$0xff]
  %v58 = vld [vmem:[%s1 + $0x168] sm:$0xff]
  %v59 = vld [vmem:[%s1 + $0x170] sm:$0xff]
  %v60 = vld [vmem:[%s1 + $0x178] sm:$0xff]
  %v61 = vld [vmem:[%s1 + $0x180] sm:$0xff]
  %v62 = vld [vmem:[%s1 + $0x188] sm:$0xff]
  %v63 = vld [vmem:[%s1 + $0x190] sm:$0xff]
  %v64 = vld [vmem:[%s1 + $0x198] sm:$0xff]
  %v65 = vld [vmem:[%s1 + $0x1a0] sm:$0xff]
  %v66 = vld [vmem:[%s1 + $0x1a8] sm:$0xff]
  %v67 = vld [vmem:[%s1 + $0x1b0] sm:$0xff]
  %v68 = vld [vmem:[%s1 + $0x1b8] sm:$0xff]
  %v69 = vld [vmem:[%s1 + $0x1c0] sm:$0xff]
  %v70 = vld [vmem:[%s1 + $0x1c8] sm:$0xff]
  %v71 = vld [vmem:[%s1 + $0x1d0] sm:$0xff]
  %v72 = vld [vmem:[%s1 + $0x1d8] sm:$0xff]
  %v73 = vld [vmem:[%s1 + $0x1e0] sm:$0xff]
  %v74 = vld [vmem:[%s1 + $0x1e8] sm:$0xff]
  %v75 = vld [vmem:[%s1 + $0x1f0] sm:$0xff]
  %v76 = vld [vmem:[%s1 + $0x1f8] sm:$0xff]
  %77 = vmatprep.subr.mxu0 %v44
  %78 = vmatpush1.msra.mxu0 %v43
  %79 = vmatprep.subr.mxu0 %v42
  %80 = vmatpush1.msra.mxu0 %v41
  %81 = vmatprep.subr.mxu0 %v40
  %82 = vmatpush1.msra.mxu0 %v39
  %83 = vmatprep.subr.mxu0 %v38
  %84 = vmatpush1.msra.mxu0 %v37
  %85 = vmatprep.subr.mxu0 %v36
  %86 = vmatpush1.msra.mxu0 %v35
  %87 = vmatprep.subr.mxu0 %v34
  %88 = vmatpush1.msra.mxu0 %v33
  %89 = vmatprep.subr.mxu0 %v32
  %90 = vmatpush1.msra.mxu0 %v31
  %91 = vmatprep.subr.mxu0 %v30
  %92 = vmatpush1.msra.mxu0 %v29
  %93 = vmatprep.subr.mxu0 %v28
  %94 = vmatpush1.msra.mxu0 %v27
  %95 = vmatprep.subr.mxu0 %v26
  %96 = vmatpush1.msra.mxu0 %v25
  %97 = vmatprep.subr.mxu0 %v24
  %98 = vmatpush1.msra.mxu0 %v23
  %99 = vmatprep.subr.mxu0 %v22
  %100 = vmatpush1.msra.mxu0 %v21
  %101 = vmatprep.subr.mxu0 %v20
  %102 = vmatpush1.msra.mxu0 %v19
  %103 = vmatprep.subr.mxu0 %v18
  %104 = vmatpush1.msra.mxu0 %v17
  %105 = vmatprep.subr.mxu0 %v16
  %106 = vmatpush1.msra.mxu0 %v15
  %107 = vmatprep.subr.mxu0 %v14
  %108 = vmatpush1.msra.mxu0 %v13
  %109 = vmatprep.subr.mxu0 %v76
  %110 = vmatpush2.msra.mxu0 %v75
  %111 = vmatprep.subr.mxu0 %v74
  %112 = vmatpush2.msra.mxu0 %v73
  %113 = vmatprep.subr.mxu0 %v72
  %114 = vmatpush2.msra.mxu0 %v71
  %115 = vmatprep.subr.mxu0 %v70
  %116 = vmatpush2.msra.mxu0 %v69
  %117 = vmatprep.subr.mxu0 %v68
  %118 = vmatpush2.msra.mxu0 %v67
  %119 = vmatprep.subr.mxu0 %v66
  %120 = vmatpush2.msra.mxu0 %v65
  %121 = vmatprep.subr.mxu0 %v64
  %122 = vmatpush2.msra.mxu0 %v63
  %123 = vmatprep.subr.mxu0 %v62
  %124 = vmatpush2.msra.mxu0 %v61
  %125 = vmatprep.subr.mxu0 %v60
  %126 = vmatpush2.msra.mxu0 %v59
  %127 = vmatprep.subr.mxu0 %v58
  %128 = vmatpush2.msra.mxu0 %v57
  %129 = vmatprep.subr.mxu0 %v56
  %130 = vmatpush2.msra.mxu0 %v55
  %131 = vmatprep.subr.mxu0 %v54
  %132 = vmatpush2.msra.mxu0 %v53
  %133 = vmatprep.subr.mxu0 %v52
  %134 = vmatpush2.msra.mxu0 %v51
  %135 = vmatprep.subr.mxu0 %v50
  %136 = vmatpush2.msra.mxu0 %v49
  %137 = vmatprep.subr.mxu0 %v48
  %138 = vmatpush2.msra.mxu0 %v47
  %139 = vmatprep.subr.mxu0 %v46
  %140 = vmatpush2.msra.mxu0 %v45
  %141 = vmatprep.mubr.f32.mxu0 %v12
  %142 = vmatmul.mubr.f32.gmra.mxu0 %v11
  %v143 = vpop.f32.mrf.mxu0
  %v144 = vadd.f32 0.0, %v143
  %v145 = vpop.f32.mrf.mxu0
  %v146 = vadd.f32 0.0, %v145
  %147 = vdwg.mxu0
  %148 = vst [vmem:[%s2] sm:$0xff] %v144
  %149 = vst [vmem:[%s2 + $0x8] sm:$0xff] %v146
  // Predicated region
  $region10: #{_lambda_.6} parent=0 // pred_check
    _
  $region11: #{_lambda_.6} parent=0 // pred_check_branch
    %151 = sbr.rel (0) target = $region13
  $region12: #{_lambda_.6} parent=0 // pred_region
    _
  $region13: #{_lambda_.6} parent=0 // pred_fallthru
    _
  // Predicated region
  $region14: #{_lambda_.6} parent=0 // pred_check
    _
  $region15: #{_lambda_.6} parent=0 // pred_check_branch
    %153 = sbr.rel (0) target = $region17
  $region16: #{_lambda_.6} parent=0 // pred_region
    _
  $region17: #{_lambda_.6} parent=0 // pred_fallthru
    _

// kernel: _lambda_.7
$region0: #{_lambda_.7}
  #allocation0 [shape = 'u32[]', space=smem, size = 0x4, offset = 0x4, fixed_abs, tag = 'smem constant byte address 0x4 - core index']
  #allocation1 [shape = 'u32[144,128]{1,0:T(1,128)}', space=vmem, size = 0x12000, scoped, tag = 'internal scratch']
  %s0 = inlined_call_operand.vmem [shape: f32[2,512], index: 0, kind: input, shape index: {}]
  %s1 = inlined_call_operand.vmem [shape: f32[2,512], index: 1, kind: input, shape index: {}]
  %s2 = inlined_call_operand.vmem [shape: f32[1,512], index: 2, kind: input, shape index: {}]
  %s3 = inlined_call_operand.vmem [shape: f32[2,512], index: 3, kind: output, shape index: {}]
  %s4 = sld [smem:[#allocation0]]
  $region22: #{_lambda_.7} parent=0
    _
  %s6 = ssub.s32 1, %s4
  %s7 = scalar_select 0, %s6, %s4
  // Predicated region
  $region2: #{_lambda_.7} parent=0 // pred_check
    _
  $region3: #{_lambda_.7} parent=0 // pred_check_branch
    %9 = sbr.rel (0) target = $region5
  $region4: #{_lambda_.7} parent=0 // pred_region
    _
  $region5: #{_lambda_.7} parent=0 // pred_fallthru
    _
  // Predicated region
  $region6: #{_lambda_.7} parent=0 // pred_check
    _
  $region7: #{_lambda_.7} parent=0 // pred_check_branch
    %11 = sbr.rel (0) target = $region9
  $region8: #{_lambda_.7} parent=0 // pred_region
    _
  $region9: #{_lambda_.7} parent=0 // pred_fallthru
    _
  // Predicated region
  $region10: #{_lambda_.7} parent=0 // pred_check
    _
  $region11: #{_lambda_.7} parent=0 // pred_check_branch
    %13 = sbr.rel (0) target = $region13
  $region12: #{_lambda_.7} parent=0 // pred_region
    _
  $region13: #{_lambda_.7} parent=0 // pred_fallthru
    _
  %v14 = vld [vmem:[%s0] sm:$0xff]
  %v15 = vld [vmem:[%s1] sm:$0xff]
  %v16 = vadd.f32 %v14, %v15
  %v17 = vld [vmem:[%s2] sm:$0xf]
  %v19 = vlaneseq
  %v20 = vshrl.u32 %v19, 7
  %v21 = vsub.s32 0, %v20
  %v22 = vrot.slane %v17, %v21
  %v23 = vlaneseq
  %v24 = vshrl.u32 %v23, 7
  %v25 = vsub.s32 1, %v24
  %v26 = vrot.slane %v17, %v25
  %v27 = vlaneseq
  %v28 = vshrl.u32 %v27, 7
  %v29 = vsub.s32 2, %v28
  %v30 = vrot.slane %v17, %v29
  %v31 = vlaneseq
  %v32 = vshrl.u32 %v31, 7
  %v33 = vsub.s32 3, %v32
  %v34 = vrot.slane %v17, %v33
  %v35 = vcombine.low %v22, %v26
  %v36 = vcombine.low %v30, %v34
  %v38 = vunpack.c.l.s4 1983009808
  %v39 = vunpack.c.0.s8 %v38
  %v40 = vlaneseq
  %v41 = vshrl.u32 %v40, 7
  %v42 = vsub.s32 %v39, %v41
  %v43 = vrot.slane %v35, %v42
  %v45 = vunpack.c.l.s4 1983009808
  %v46 = vunpack.c.0.s8 %v45
  %v47 = vlaneseq
  %v48 = vshrl.u32 %v47, 7
  %v49 = vsub.s32 %v46, %v48
  %v50 = vrot.slane %v36, %v49
  %v51 = vcombine.low %v43, %v50
  %v53 = vadd.f32 %v16, %v51
  %v54 = vmax.f32 %v53, 0.0
  %55 = vst [vmem:[%s3] sm:$0xff] %v54
  // Predicated region
  $region14: #{_lambda_.7} parent=0 // pred_check
    _
  $region15: #{_lambda_.7} parent=0 // pred_check_branch
    %57 = sbr.rel (0) target = $region17
  $region16: #{_lambda_.7} parent=0 // pred_region
    _
  $region17: #{_lambda_.7} parent=0 // pred_fallthru
    _
  // Predicated region
  $region18: #{_lambda_.7} parent=0 // pred_check
    _
  $region19: #{_lambda_.7} parent=0 // pred_check_branch
    %59 = sbr.rel (0) target = $region21
  $region20: #{_lambda_.7} parent=0 // pred_region
    _
  $region21: #{_lambda_.7} parent=0 // pred_fallthru
    _

</llo_original>
